<compile_context>
chip_gen: v5e
topology: v5e:2x2
jax: 0.10.0
libtpu: 0.0.40
codegen_flags: <defaults>
</compile_context>

<pallas_src>
import functools

import jax
import jax.numpy as jnp
from jax.experimental import pallas as pl

# ----------------------------- model dims (small) ----------------------------
B = 2          # batch
S = 8          # sequence length (len_q = len_k = len_v)
D_MODEL = 32   # d_model
N_HEAD = 4
D_K = 8
D_V = 8
EPS = 1e-6


# ----------------------------- fused MHA kernel ------------------------------
def _mha_kernel(q_ref, k_ref, v_ref, wqkv_ref, wo_ref, gamma_ref, beta_ref,
                o_ref, *, n_head, d_k, d_v, self_attn):
    b, l_q, d_model = q_ref.shape
    inv_temp = 1.0 / (d_k ** 0.5)

    def to_groups(x):
        # (B, L, D) -> (H*B, L, D); group g = h*B + b holds batch b for head h.
        return jnp.concatenate([x] * n_head, axis=0)

    # dot_general dimension numbers: contract one dim, batch over leading dim.
    def batched(lhs_c, rhs_c):
        return (((lhs_c,), (rhs_c,)), ((0,), (0,)))

    x_q = q_ref[...].astype(jnp.float32)          # (B, Lq, D); also the residual
    wqkv = wqkv_ref[...].astype(jnp.float32)      # (H*B, D, 2*dk + dv)

    if self_attn:
        # One fused QKV projection: x @ [Wq_h | Wk_h | Wv_h], batched over groups.
        proj = jax.lax.dot_general(to_groups(x_q), wqkv, batched(2, 1),
                                   preferred_element_type=jnp.float32)
        q_h = proj[:, :, :d_k]                    # (G, Lq, dk)
        k_h = proj[:, :, d_k:2 * d_k]             # (G, Lk, dk)
        v_h = proj[:, :, 2 * d_k:]                # (G, Lv, dv)
    else:
        x_k = k_ref[...].astype(jnp.float32)
        x_v = v_ref[...].astype(jnp.float32)
        q_h = jax.lax.dot_general(to_groups(x_q), wqkv[:, :, :d_k],
                                  batched(2, 1), preferred_element_type=jnp.float32)
        k_h = jax.lax.dot_general(to_groups(x_k), wqkv[:, :, d_k:2 * d_k],
                                  batched(2, 1), preferred_element_type=jnp.float32)
        v_h = jax.lax.dot_general(to_groups(x_v), wqkv[:, :, 2 * d_k:],
                                  batched(2, 1), preferred_element_type=jnp.float32)

    # Scaled dot-product attention, batched over all (head, batch) groups.
    scores = jax.lax.dot_general(q_h * inv_temp, k_h, batched(2, 2),
                                 preferred_element_type=jnp.float32)   # (G, Lq, Lk)
    m = jnp.max(scores, axis=-1, keepdims=True)
    p = jnp.exp(scores - m)
    p = p * pl.reciprocal(jnp.sum(p, axis=-1, keepdims=True), approx=True)
    attn_out = jax.lax.dot_general(p, v_h, batched(2, 1),
                                   preferred_element_type=jnp.float32)  # (G, Lq, dv)

    # Output projection: concat_h(out_h) @ Wo == sum_h out_h @ Wo_h (no lane concat).
    w_o = wo_ref[...].astype(jnp.float32)                                # (G, dv, D)
    fc_g = jax.lax.dot_general(attn_out, w_o, batched(2, 1),
                               preferred_element_type=jnp.float32)       # (G, Lq, D)
    y = fc_g[0:b]
    for h in range(1, n_head):
        y = y + fc_g[h * b:(h + 1) * b]                                  # (B, Lq, D)

    # Residual + LayerNorm(d_model) with affine.
    y = (y + x_q).reshape(b * l_q, d_model)
    mean = jnp.mean(y, axis=-1, keepdims=True)
    var = jnp.mean((y - mean) ** 2, axis=-1, keepdims=True)
    normed = (y - mean) * jax.lax.rsqrt(var + EPS)
    out = normed * gamma_ref[...] + beta_ref[...]
    o_ref[...] = out.reshape(b, l_q, d_model).astype(o_ref.dtype)


def multi_head_attention(q, k, v, params):
    """Pallas forward of MultiHeadAttention. q, k, v: (B, L, d_model)."""
    self_attn = (q is k) and (k is v)   # fused-QKV fast path for self-attention
    kernel = functools.partial(_mha_kernel, n_head=N_HEAD, d_k=D_K, d_v=D_V,
                               self_attn=self_attn)
    # No grid: full arrays are single VMEM-resident blocks (default BlockSpecs).
    return pl.pallas_call(
        kernel,
        out_shape=jax.ShapeDtypeStruct(q.shape, q.dtype),
    )(q, k, v, params["wqkv_g"], params["wo_g"], params["ln_g"], params["ln_b"])


# ----------------------------- parameter init --------------------------------
def init_params(key):
    kq, kk, kv, ko = jax.random.split(key, 4)
    scale = 0.05
    wq = scale * jax.random.normal(kq, (D_MODEL, N_HEAD * D_K), jnp.float32)
    wk = scale * jax.random.normal(kk, (D_MODEL, N_HEAD * D_K), jnp.float32)
    wv = scale * jax.random.normal(kv, (D_MODEL, N_HEAD * D_V), jnp.float32)
    wo = scale * jax.random.normal(ko, (N_HEAD * D_V, D_MODEL), jnp.float32)
    ln_g = jnp.ones((1, D_MODEL), jnp.float32)
    ln_b = jnp.zeros((1, D_MODEL), jnp.float32)

    # Head-major, fused [Wq_h | Wk_h | Wv_h] weights, tiled per batch so that
    # group g = h*B + b uses head h = g // B (matches the in-kernel grouping).
    wq_h = wq.reshape(D_MODEL, N_HEAD, D_K).transpose(1, 0, 2)   # (H, D, dk)
    wk_h = wk.reshape(D_MODEL, N_HEAD, D_K).transpose(1, 0, 2)   # (H, D, dk)
    wv_h = wv.reshape(D_MODEL, N_HEAD, D_V).transpose(1, 0, 2)   # (H, D, dv)
    wqkv_h = jnp.concatenate([wq_h, wk_h, wv_h], axis=-1)        # (H, D, 2dk+dv)
    wo_h = wo.reshape(N_HEAD, D_V, D_MODEL)                      # (H, dv, D)

    return dict(
        wqkv_g=jnp.repeat(wqkv_h, B, axis=0),    # (H*B, D, 2dk+dv)
        wo_g=jnp.repeat(wo_h, B, axis=0),        # (H*B, dv, D)
        ln_g=ln_g, ln_b=ln_b,
        # original-layout weights, kept only for the pure-JAX reference
        wq=wq, wk=wk, wv=wv, wo=wo,
    )


# ----------------------------- pure-JAX reference -----------------------------
def mha_ref(q, k, v, params):
    b, l_q, _ = q.shape
    residual = q
    qh = (q @ params["wq"]).reshape(b, l_q, N_HEAD, D_K).transpose(0, 2, 1, 3)
    kh = (k @ params["wk"]).reshape(b, -1, N_HEAD, D_K).transpose(0, 2, 1, 3)
    vh = (v @ params["wv"]).reshape(b, -1, N_HEAD, D_V).transpose(0, 2, 1, 3)
    attn = jnp.einsum("bhqd,bhkd->bhqk", qh / (D_K ** 0.5), kh)
    attn = jax.nn.softmax(attn, axis=-1)
    o = jnp.einsum("bhqk,bhkd->bhqd", attn, vh)
    o = o.transpose(0, 2, 1, 3).reshape(b, l_q, N_HEAD * D_V)
    o = o @ params["wo"] + residual
    mean = jnp.mean(o, axis=-1, keepdims=True)
    var = jnp.mean((o - mean) ** 2, axis=-1, keepdims=True)
    return ((o - mean) / jnp.sqrt(var + EPS)) * params["ln_g"].reshape(-1) \
        + params["ln_b"].reshape(-1)


# ----------------------------- main -------------------------------------------
if __name__ == "__main__":
    key = jax.random.PRNGKey(0)
    k_q, k_k, k_v, k_p = jax.random.split(key, 4)
    params = init_params(k_p)

    # Self-attention (fused single-matmul QKV path).
    x = jax.random.normal(k_q, (B, S, D_MODEL), jnp.float32)
    out_self = jax.block_until_ready(multi_head_attention(x, x, x, params))
    ref_self = mha_ref(x, x, x, params)
    assert out_self.shape == (B, S, D_MODEL)
    assert jnp.allclose(out_self, ref_self, atol=2e-3, rtol=2e-3), \
        "self-attention output mismatch vs reference"

    # Cross-attention (distinct q, k, v) path, matching the module's general forward.
    q_in = x
    k_in = jax.random.normal(k_k, (B, S, D_MODEL), jnp.float32)
    v_in = jax.random.normal(k_v, (B, S, D_MODEL), jnp.float32)
    out_cross = jax.block_until_ready(multi_head_attention(q_in, k_in, v_in, params))
    ref_cross = mha_ref(q_in, k_in, v_in, params)
    assert jnp.allclose(out_cross, ref_cross, atol=2e-3, rtol=2e-3), \
        "cross-attention output mismatch vs reference"

    print("KERNEL_OK")
</pallas_src>

<mosaic_0001>
module attributes {stable_mosaic.version = 11 : i64} {
  func.func @_mha_kernel(%arg0: memref<2x8x32xf32, #tpu.memory_space<vmem>>, %arg1: memref<2x8x32xf32, #tpu.memory_space<vmem>>, %arg2: memref<2x8x32xf32, #tpu.memory_space<vmem>>, %arg3: memref<8x32x24xf32, #tpu.memory_space<vmem>>, %arg4: memref<8x8x32xf32, #tpu.memory_space<vmem>>, %arg5: memref<1x32xf32, #tpu.memory_space<vmem>>, %arg6: memref<1x32xf32, #tpu.memory_space<vmem>>, %arg7: memref<2x8x32xf32, #tpu.memory_space<vmem>>) attributes {dimension_semantics = [], scalar_prefetch = 0 : i64, scratch_operands = 0 : i64, tpu.core_type = #tpu.core_type<tc>} {
    %c0 = arith.constant 0 : index
    %c0_0 = arith.constant 0 : index
    %c0_1 = arith.constant 0 : index
    %0 = vector.load %arg0[%c0, %c0_0, %c0_1] : memref<2x8x32xf32, #tpu.memory_space<vmem>>, vector<2x8x32xf32>
    %c0_2 = arith.constant 0 : index
    %c0_3 = arith.constant 0 : index
    %c0_4 = arith.constant 0 : index
    %1 = vector.load %arg3[%c0_2, %c0_3, %c0_4] : memref<8x32x24xf32, #tpu.memory_space<vmem>>, vector<8x32x24xf32>
    %2 = tpu.concatenate %0, %0, %0, %0 in 0 : vector<2x8x32xf32>, vector<2x8x32xf32>, vector<2x8x32xf32>, vector<2x8x32xf32> -> vector<8x8x32xf32>
    %cst = arith.constant dense<0.000000e+00> : vector<8x8x24xf32>
    %3 = tpu.matmul %2, %1, %cst {dimension_numbers = #tpu.dot_dimension_numbers<[2], [1], [1], [2], [0, 0, 0, 1, 1, 2], [0], [0]>} : vector<8x8x32xf32>, vector<8x32x24xf32>, vector<8x8x24xf32> -> vector<8x8x24xf32>
    %4 = vector.extract_strided_slice %3 {offsets = [0, 0, 0], sizes = [8, 8, 8], strides = [1, 1, 1]} : vector<8x8x24xf32> to vector<8x8x8xf32>
    %5 = vector.extract_strided_slice %3 {offsets = [0, 0, 8], sizes = [8, 8, 8], strides = [1, 1, 1]} : vector<8x8x24xf32> to vector<8x8x8xf32>
    %6 = vector.extract_strided_slice %3 {offsets = [0, 0, 16], sizes = [8, 8, 8], strides = [1, 1, 1]} : vector<8x8x24xf32> to vector<8x8x8xf32>
    %cst_5 = arith.constant 0.353553385 : f32
    %7 = vector.broadcast %cst_5 : f32 to vector<8x8x8xf32>
    %8 = arith.mulf %4, %7 : vector<8x8x8xf32>
    %cst_6 = arith.constant dense<0.000000e+00> : vector<8x8x8xf32>
    %9 = tpu.matmul %8, %5, %cst_6 {dimension_numbers = #tpu.dot_dimension_numbers<[2], [2], [1], [1], [0, 0, 0, 1, 1, 1], [0], [0]>} : vector<8x8x8xf32>, vector<8x8x8xf32>, vector<8x8x8xf32> -> vector<8x8x8xf32>
    %cst_7 = arith.constant dense<0xFF800000> : vector<8x8xf32>
    %10 = vector.multi_reduction <maximumf>, %9, %cst_7 [2] : vector<8x8x8xf32> to vector<8x8xf32>
    %11 = vector.shape_cast %10 : vector<8x8xf32> to vector<8x8x1xf32>
    %12 = vector.broadcast %11 : vector<8x8x1xf32> to vector<8x8x8xf32>
    %13 = arith.subf %9, %12 : vector<8x8x8xf32>
    %14 = math.exp %13 : vector<8x8x8xf32>
    %cst_8 = arith.constant dense<0.000000e+00> : vector<8x8xf32>
    %15 = vector.multi_reduction <add>, %14, %cst_8 [2] : vector<8x8x8xf32> to vector<8x8xf32>
    %16 = vector.shape_cast %15 : vector<8x8xf32> to vector<8x8x1xf32>
    %17 = tpu.reciprocal %16 {approx = true} : vector<8x8x1xf32> -> vector<8x8x1xf32>
    %18 = vector.broadcast %17 : vector<8x8x1xf32> to vector<8x8x8xf32>
    %19 = arith.mulf %14, %18 : vector<8x8x8xf32>
    %cst_9 = arith.constant dense<0.000000e+00> : vector<8x8x8xf32>
    %20 = tpu.matmul %19, %6, %cst_9 {dimension_numbers = #tpu.dot_dimension_numbers<[2], [1], [1], [2], [0, 0, 0, 1, 1, 2], [0], [0]>} : vector<8x8x8xf32>, vector<8x8x8xf32>, vector<8x8x8xf32> -> vector<8x8x8xf32>
    %c0_10 = arith.constant 0 : index
    %c0_11 = arith.constant 0 : index
    %c0_12 = arith.constant 0 : index
    %21 = vector.load %arg4[%c0_10, %c0_11, %c0_12] : memref<8x8x32xf32, #tpu.memory_space<vmem>>, vector<8x8x32xf32>
    %cst_13 = arith.constant dense<0.000000e+00> : vector<8x8x32xf32>
    %22 = tpu.matmul %20, %21, %cst_13 {dimension_numbers = #tpu.dot_dimension_numbers<[2], [1], [1], [2], [0, 0, 0, 1, 1, 2], [0], [0]>} : vector<8x8x8xf32>, vector<8x8x32xf32>, vector<8x8x32xf32> -> vector<8x8x32xf32>
    %23 = vector.extract_strided_slice %22 {offsets = [0, 0, 0], sizes = [2, 8, 32], strides = [1, 1, 1]} : vector<8x8x32xf32> to vector<2x8x32xf32>
    %24 = vector.extract_strided_slice %22 {offsets = [2, 0, 0], sizes = [2, 8, 32], strides = [1, 1, 1]} : vector<8x8x32xf32> to vector<2x8x32xf32>
    %25 = arith.addf %23, %24 : vector<2x8x32xf32>
    %26 = vector.extract_strided_slice %22 {offsets = [4, 0, 0], sizes = [2, 8, 32], strides = [1, 1, 1]} : vector<8x8x32xf32> to vector<2x8x32xf32>
    %27 = arith.addf %25, %26 : vector<2x8x32xf32>
    %28 = vector.extract_strided_slice %22 {offsets = [6, 0, 0], sizes = [2, 8, 32], strides = [1, 1, 1]} : vector<8x8x32xf32> to vector<2x8x32xf32>
    %29 = arith.addf %27, %28 : vector<2x8x32xf32>
    %30 = arith.addf %29, %0 : vector<2x8x32xf32>
    %31 = vector.shape_cast %30 : vector<2x8x32xf32> to vector<16x32xf32>
    %cst_14 = arith.constant dense<0.000000e+00> : vector<16xf32>
    %32 = vector.multi_reduction <add>, %31, %cst_14 [1] : vector<16x32xf32> to vector<16xf32>
    %33 = vector.shape_cast %32 : vector<16xf32> to vector<16x1xf32>
    %cst_15 = arith.constant 3.200000e+01 : f32
    %34 = vector.broadcast %cst_15 : f32 to vector<16x1xf32>
    %35 = arith.divf %33, %34 : vector<16x1xf32>
    %36 = vector.broadcast %35 : vector<16x1xf32> to vector<16x32xf32>
    %37 = arith.subf %31, %36 : vector<16x32xf32>
    %38 = arith.mulf %37, %37 : vector<16x32xf32>
    %cst_16 = arith.constant dense<0.000000e+00> : vector<16xf32>
    %39 = vector.multi_reduction <add>, %38, %cst_16 [1] : vector<16x32xf32> to vector<16xf32>
    %40 = vector.shape_cast %39 : vector<16xf32> to vector<16x1xf32>
    %cst_17 = arith.constant 3.200000e+01 : f32
    %41 = vector.broadcast %cst_17 : f32 to vector<16x1xf32>
    %42 = arith.divf %40, %41 : vector<16x1xf32>
    %43 = vector.broadcast %35 : vector<16x1xf32> to vector<16x32xf32>
    %44 = arith.subf %31, %43 : vector<16x32xf32>
    %cst_18 = arith.constant 9.99999997E-7 : f32
    %45 = vector.broadcast %cst_18 : f32 to vector<16x1xf32>
    %46 = arith.addf %42, %45 : vector<16x1xf32>
    %47 = math.rsqrt %46 : vector<16x1xf32>
    %48 = vector.broadcast %47 : vector<16x1xf32> to vector<16x32xf32>
    %49 = arith.mulf %44, %48 : vector<16x32xf32>
    %c0_19 = arith.constant 0 : index
    %c0_20 = arith.constant 0 : index
    %50 = vector.load %arg5[%c0_19, %c0_20] : memref<1x32xf32, #tpu.memory_space<vmem>>, vector<1x32xf32>
    %51 = vector.broadcast %50 : vector<1x32xf32> to vector<16x32xf32>
    %52 = arith.mulf %49, %51 : vector<16x32xf32>
    %c0_21 = arith.constant 0 : index
    %c0_22 = arith.constant 0 : index
    %53 = vector.load %arg6[%c0_21, %c0_22] : memref<1x32xf32, #tpu.memory_space<vmem>>, vector<1x32xf32>
    %54 = vector.broadcast %53 : vector<1x32xf32> to vector<16x32xf32>
    %55 = arith.addf %52, %54 : vector<16x32xf32>
    %56 = vector.shape_cast %55 : vector<16x32xf32> to vector<2x8x32xf32>
    %c0_23 = arith.constant 0 : index
    %c0_24 = arith.constant 0 : index
    %c0_25 = arith.constant 0 : index
    %57 = vector.load %arg7[%c0_23, %c0_24, %c0_25] : memref<2x8x32xf32, #tpu.memory_space<vmem>>, vector<2x8x32xf32>
    tpu.vector_store %arg7[%c0_23, %c0_24, %c0_25], %56 {strides = array<i32>} : memref<2x8x32xf32, #tpu.memory_space<vmem>>, vector<2x8x32xf32>,
    return
  }
}

</mosaic_0001>

<llo_original>
// kernel: tpu_custom_call.1
$region0: #{tpu_custom_call.1}
  #allocation0 [shape = 'u32[]', space=smem, size = 0x4, offset = 0x4, fixed_abs, tag = 'smem constant byte address 0x4 - core index']
  #allocation1 [shape = 'u32[72,128]{1,0:T(1,128)}', space=vmem, size = 0x9000, scoped, tag = 'internal scratch']
  %s0 = inlined_call_operand.vmem [shape: f32[2,8,32], index: 0, kind: input, shape index: {}]
  %s1 = inlined_call_operand.vmem [shape: f32[2,8,32], index: 1, kind: input, shape index: {}]
  %s2 = inlined_call_operand.vmem [shape: f32[2,8,32], index: 2, kind: input, shape index: {}]
  %s3 = inlined_call_operand.vmem [shape: f32[8,32,24], index: 3, kind: input, shape index: {}]
  %s4 = inlined_call_operand.vmem [shape: f32[8,8,32], index: 4, kind: input, shape index: {}]
  %s5 = inlined_call_operand.vmem [shape: f32[1,32], index: 5, kind: input, shape index: {}]
  %s6 = inlined_call_operand.vmem [shape: f32[1,32], index: 6, kind: input, shape index: {}]
  %s7 = inlined_call_operand.hbm [shape: f32[2,8,32], index: 7, kind: output, shape index: {}]
  %s8 = sld [smem:[#allocation0]]
  $region38: #{tpu_custom_call.1} parent=0
    _
  %s10 = ssub.s32 1, %s8
  %s11 = scalar_select 0, %s10, %s8
  $region1: #{tpu_custom_call.1} parent=0
    #allocation2 [shape = 'u8[8192]{0}', space=vmem, size = 0x2000, scoped, tag = 'output window, operand 0, single buffered']
    #allocation3 [shape = 's32[1]{0}', space=sflag, size = 0x4, scoped, tag = 'scoped memory for tpu_custom_call.1']
    %12 = vsyncpa [#allocation3], 0
    // Predicated region
    $region2: #{tpu_custom_call.1} parent=1 // pred_check
      _
    $region3: #{tpu_custom_call.1} parent=1 // pred_check_branch
      %14 = sbr.rel (0) target = $region5
    $region4: #{tpu_custom_call.1} parent=1 // pred_region
      _
    $region5: #{tpu_custom_call.1} parent=1 // pred_fallthru
      _
    // Predicated region
    $region6: #{tpu_custom_call.1} parent=1 // pred_check
      _
    $region7: #{tpu_custom_call.1} parent=1 // pred_check_branch
      %16 = sbr.rel (0) target = $region9
    $region8: #{tpu_custom_call.1} parent=1 // pred_region
      _
    $region9: #{tpu_custom_call.1} parent=1 // pred_fallthru
      _
    // Predicated region
    $region10: #{tpu_custom_call.1} parent=1 // pred_check
      _
    $region11: #{tpu_custom_call.1} parent=1 // pred_check_branch
      %18 = sbr.rel (0) target = $region13
    $region12: #{tpu_custom_call.1} parent=1 // pred_region
      _
    $region13: #{tpu_custom_call.1} parent=1 // pred_fallthru
      _
    // Predicated region
    $region14: #{tpu_custom_call.1} parent=1 // pred_check
      _
    $region15: #{tpu_custom_call.1} parent=1 // pred_check_branch
      %20 = sbr.rel (0) target = $region17
    $region16: #{tpu_custom_call.1} parent=1 // pred_region
      _
    $region17: #{tpu_custom_call.1} parent=1 // pred_fallthru
      _
    // Predicated region
    $region18: #{tpu_custom_call.1} parent=1 // pred_check
      _
    $region19: #{tpu_custom_call.1} parent=1 // pred_check_branch
      %22 = sbr.rel (0) target = $region21
    $region20: #{tpu_custom_call.1} parent=1 // pred_region
      _
    $region21: #{tpu_custom_call.1} parent=1 // pred_fallthru
      _
    // Predicated region
    $region22: #{tpu_custom_call.1} parent=1 // pred_check
      _
    $region23: #{tpu_custom_call.1} parent=1 // pred_check_branch
      %24 = sbr.rel (0) target = $region25
    $region24: #{tpu_custom_call.1} parent=1 // pred_region
      _
    $region25: #{tpu_custom_call.1} parent=1 // pred_fallthru
      _
    // Predicated region
    $region26: #{tpu_custom_call.1} parent=1 // pred_check
      _
    $region27: #{tpu_custom_call.1} parent=1 // pred_check_branch
      %26 = sbr.rel (0) target = $region29
    $region28: #{tpu_custom_call.1} parent=1 // pred_region
      _
    $region29: #{tpu_custom_call.1} parent=1 // pred_fallthru
      _
    %v27 = vld [vmem:[%s0] sm:$0xff]
    %v28 = vld [vmem:[%s0 + $0x8] sm:$0xff]
    %v29 = vld [vmem:[%s3] sm:$0xff]
    %v30 = vld [vmem:[%s3 + $0x8] sm:$0xff]
    %v31 = vld [vmem:[%s3 + $0x10] sm:$0xff]
    %v32 = vld [vmem:[%s3 + $0x18] sm:$0xff]
    %v33 = vld [vmem:[%s3 + $0x20] sm:$0xff]
    %v34 = vld [vmem:[%s3 + $0x28] sm:$0xff]
    %v35 = vld [vmem:[%s3 + $0x30] sm:$0xff]
    %v36 = vld [vmem:[%s3 + $0x38] sm:$0xff]
    %v37 = vld [vmem:[%s3 + $0x40] sm:$0xff]
    %v38 = vld [vmem:[%s3 + $0x48] sm:$0xff]
    %v39 = vld [vmem:[%s3 + $0x50] sm:$0xff]
    %v40 = vld [vmem:[%s3 + $0x58] sm:$0xff]
    %v41 = vld [vmem:[%s3 + $0x60] sm:$0xff]
    %v42 = vld [vmem:[%s3 + $0x68] sm:$0xff]
    %v43 = vld [vmem:[%s3 + $0x70] sm:$0xff]
    %v44 = vld [vmem:[%s3 + $0x78] sm:$0xff]
    %v45 = vld [vmem:[%s3 + $0x80] sm:$0xff]
    %v46 = vld [vmem:[%s3 + $0x88] sm:$0xff]
    %v47 = vld [vmem:[%s3 + $0x90] sm:$0xff]
    %v48 = vld [vmem:[%s3 + $0x98] sm:$0xff]
    %v49 = vld [vmem:[%s3 + $0xa0] sm:$0xff]
    %v50 = vld [vmem:[%s3 + $0xa8] sm:$0xff]
    %v51 = vld [vmem:[%s3 + $0xb0] sm:$0xff]
    %v52 = vld [vmem:[%s3 + $0xb8] sm:$0xff]
    %v53 = vld [vmem:[%s3 + $0xc0] sm:$0xff]
    %v54 = vld [vmem:[%s3 + $0xc8] sm:$0xff]
    %v55 = vld [vmem:[%s3 + $0xd0] sm:$0xff]
    %v56 = vld [vmem:[%s3 + $0xd8] sm:$0xff]
    %v57 = vld [vmem:[%s3 + $0xe0] sm:$0xff]
    %v58 = vld [vmem:[%s3 + $0xe8] sm:$0xff]
    %v59 = vld [vmem:[%s3 + $0xf0] sm:$0xff]
    %v60 = vld [vmem:[%s3 + $0xf8] sm:$0xff]
    %vm61 = vcmask 261120
    %v63 = vsel %vm61, %v27, 0
    %65 = vmatpush.msra.mxu0 0.0
    %66 = vmatpush.msra.mxu0 0.0
    %67 = vmatpush.msra.mxu0 0.0
    %68 = vmatpush.msra.mxu0 0.0
    %69 = vmatpush.msra.mxu0 0.0
    %70 = vmatpush.msra.mxu0 0.0
    %71 = vmatpush.msra.mxu0 0.0
    %72 = vmatpush.msra.mxu0 0.0
    %73 = vmatpush.msra.mxu0 0.0
    %74 = vmatpush.msra.mxu0 0.0
    %75 = vmatpush.msra.mxu0 0.0
    %76 = vmatpush.msra.mxu0 0.0
    %77 = vmatpush.msra.mxu0 %v32
    %78 = vmatpush.msra.mxu0 %v31
    %79 = vmatpush.msra.mxu0 %v30
    %80 = vmatpush.msra.mxu0 %v29
    %81 = vmatmul.f32.gmra.mxu0 %v63
    %v82 = vpop.f32.mrf.mxu0
    %v83 = vadd.f32 0.0, %v82
    %84 = vdwg.mxu0
    %v86 = vsel %vm61, %v28, 0
    %88 = vmatpush.msra.mxu0 0.0
    %89 = vmatpush.msra.mxu0 0.0
    %90 = vmatpush.msra.mxu0 0.0
    %91 = vmatpush.msra.mxu0 0.0
    %92 = vmatpush.msra.mxu0 0.0
    %93 = vmatpush.msra.mxu0 0.0
    %94 = vmatpush.msra.mxu0 0.0
    %95 = vmatpush.msra.mxu0 0.0
    %96 = vmatpush.msra.mxu0 0.0
    %97 = vmatpush.msra.mxu0 0.0
    %98 = vmatpush.msra.mxu0 0.0
    %99 = vmatpush.msra.mxu0 0.0
    %100 = vmatpush.msra.mxu0 %v36
    %101 = vmatpush.msra.mxu0 %v35
    %102 = vmatpush.msra.mxu0 %v34
    %103 = vmatpush.msra.mxu0 %v33
    %104 = vmatmul.f32.gmra.mxu0 %v86
    %v105 = vpop.f32.mrf.mxu0
    %v106 = vadd.f32 0.0, %v105
    %107 = vdwg.mxu0
    %108 = vmatpush.msra.mxu0 0.0
    %109 = vmatpush.msra.mxu0 0.0
    %110 = vmatpush.msra.mxu0 0.0
    %111 = vmatpush.msra.mxu0 0.0
    %112 = vmatpush.msra.mxu0 0.0
    %113 = vmatpush.msra.mxu0 0.0
    %114 = vmatpush.msra.mxu0 0.0
    %115 = vmatpush.msra.mxu0 0.0
    %116 = vmatpush.msra.mxu0 0.0
    %117 = vmatpush.msra.mxu0 0.0
    %118 = vmatpush.msra.mxu0 0.0
    %119 = vmatpush.msra.mxu0 0.0
    %120 = vmatpush.msra.mxu0 %v40
    %121 = vmatpush.msra.mxu0 %v39
    %122 = vmatpush.msra.mxu0 %v38
    %123 = vmatpush.msra.mxu0 %v37
    %124 = vmatmul.f32.gmra.mxu0 %v63
    %v125 = vpop.f32.mrf.mxu0
    %v126 = vadd.f32 0.0, %v125
    %127 = vdwg.mxu0
    %128 = vmatpush.msra.mxu0 0.0
    %129 = vmatpush.msra.mxu0 0.0
    %130 = vmatpush.msra.mxu0 0.0
    %131 = vmatpush.msra.mxu0 0.0
    %132 = vmatpush.msra.mxu0 0.0
    %133 = vmatpush.msra.mxu0 0.0
    %134 = vmatpush.msra.mxu0 0.0
    %135 = vmatpush.msra.mxu0 0.0
    %136 = vmatpush.msra.mxu0 0.0
    %137 = vmatpush.msra.mxu0 0.0
    %138 = vmatpush.msra.mxu0 0.0
    %139 = vmatpush.msra.mxu0 0.0
    %140 = vmatpush.msra.mxu0 %v44
    %141 = vmatpush.msra.mxu0 %v43
    %142 = vmatpush.msra.mxu0 %v42
    %143 = vmatpush.msra.mxu0 %v41
    %144 = vmatmul.f32.gmra.mxu0 %v86
    %v145 = vpop.f32.mrf.mxu0
    %v146 = vadd.f32 0.0, %v145
    %147 = vdwg.mxu0
    %148 = vmatpush.msra.mxu0 0.0
    %149 = vmatpush.msra.mxu0 0.0
    %150 = vmatpush.msra.mxu0 0.0
    %151 = vmatpush.msra.mxu0 0.0
    %152 = vmatpush.msra.mxu0 0.0
    %153 = vmatpush.msra.mxu0 0.0
    %154 = vmatpush.msra.mxu0 0.0
    %155 = vmatpush.msra.mxu0 0.0
    %156 = vmatpush.msra.mxu0 0.0
    %157 = vmatpush.msra.mxu0 0.0
    %158 = vmatpush.msra.mxu0 0.0
    %159 = vmatpush.msra.mxu0 0.0
    %160 = vmatpush.msra.mxu0 %v48
    %161 = vmatpush.msra.mxu0 %v47
    %162 = vmatpush.msra.mxu0 %v46
    %163 = vmatpush.msra.mxu0 %v45
    %164 = vmatmul.f32.gmra.mxu0 %v63
    %v165 = vpop.f32.mrf.mxu0
    %v166 = vadd.f32 0.0, %v165
    %167 = vdwg.mxu0
    %168 = vmatpush.msra.mxu0 0.0
    %169 = vmatpush.msra.mxu0 0.0
    %170 = vmatpush.msra.mxu0 0.0
    %171 = vmatpush.msra.mxu0 0.0
    %172 = vmatpush.msra.mxu0 0.0
    %173 = vmatpush.msra.mxu0 0.0
    %174 = vmatpush.msra.mxu0 0.0
    %175 = vmatpush.msra.mxu0 0.0
    %176 = vmatpush.msra.mxu0 0.0
    %177 = vmatpush.msra.mxu0 0.0
    %178 = vmatpush.msra.mxu0 0.0
    %179 = vmatpush.msra.mxu0 0.0
    %180 = vmatpush.msra.mxu0 %v52
    %181 = vmatpush.msra.mxu0 %v51
    %182 = vmatpush.msra.mxu0 %v50
    %183 = vmatpush.msra.mxu0 %v49
    %184 = vmatmul.f32.gmra.mxu0 %v86
    %v185 = vpop.f32.mrf.mxu0
    %v186 = vadd.f32 0.0, %v185
    %187 = vdwg.mxu0
    %188 = vmatpush.msra.mxu0 0.0
    %189 = vmatpush.msra.mxu0 0.0
    %190 = vmatpush.msra.mxu0 0.0
    %191 = vmatpush.msra.mxu0 0.0
    %192 = vmatpush.msra.mxu0 0.0
    %193 = vmatpush.msra.mxu0 0.0
    %194 = vmatpush.msra.mxu0 0.0
    %195 = vmatpush.msra.mxu0 0.0
    %196 = vmatpush.msra.mxu0 0.0
    %197 = vmatpush.msra.mxu0 0.0
    %198 = vmatpush.msra.mxu0 0.0
    %199 = vmatpush.msra.mxu0 0.0
    %200 = vmatpush.msra.mxu0 %v56
    %201 = vmatpush.msra.mxu0 %v55
    %202 = vmatpush.msra.mxu0 %v54
    %203 = vmatpush.msra.mxu0 %v53
    %204 = vmatmul.f32.gmra.mxu0 %v63
    %v205 = vpop.f32.mrf.mxu0
    %v206 = vadd.f32 0.0, %v205
    %207 = vdwg.mxu0
    %208 = vmatpush.msra.mxu0 0.0
    %209 = vmatpush.msra.mxu0 0.0
    %210 = vmatpush.msra.mxu0 0.0
    %211 = vmatpush.msra.mxu0 0.0
    %212 = vmatpush.msra.mxu0 0.0
    %213 = vmatpush.msra.mxu0 0.0
    %214 = vmatpush.msra.mxu0 0.0
    %215 = vmatpush.msra.mxu0 0.0
    %216 = vmatpush.msra.mxu0 0.0
    %217 = vmatpush.msra.mxu0 0.0
    %218 = vmatpush.msra.mxu0 0.0
    %219 = vmatpush.msra.mxu0 0.0
    %220 = vmatpush.msra.mxu0 %v60
    %221 = vmatpush.msra.mxu0 %v59
    %222 = vmatpush.msra.mxu0 %v58
    %223 = vmatpush.msra.mxu0 %v57
    %224 = vmatmul.f32.gmra.mxu0 %v86
    %v225 = vpop.f32.mrf.mxu0
    %v226 = vadd.f32 0.0, %v225
    %227 = vdwg.mxu0
    %v228 = vmul.f32 %v83, 0.35355338
    %v229 = vmul.f32 %v106, 0.35355338
    %v230 = vmul.f32 %v126, 0.35355338
    %v231 = vmul.f32 %v146, 0.35355338
    %v232 = vmul.f32 %v166, 0.35355338
    %v233 = vmul.f32 %v186, 0.35355338
    %v234 = vmul.f32 %v206, 0.35355338
    %v235 = vmul.f32 %v226, 0.35355338
    %237 = vrot.lane.b32.xlu0 %v83, 120
    %v238 = vpop.permute.xlu0 %237
    %vm239 = vcmask 64512
    %v241 = vsel %vm239, %v228, 0
    %v243 = vsel %vm239, %v238, 0
    %245 = vmatpush.xpose.msra.mxu0 0.0
    %246 = vmatpush.xpose.msra.mxu0 0.0
    %247 = vmatpush.xpose.msra.mxu0 0.0
    %248 = vmatpush.xpose.msra.mxu0 0.0
    %249 = vmatpush.xpose.msra.mxu0 0.0
    %250 = vmatpush.xpose.msra.mxu0 0.0
    %251 = vmatpush.xpose.msra.mxu0 0.0
    %252 = vmatpush.xpose.msra.mxu0 0.0
    %253 = vmatpush.xpose.msra.mxu0 0.0
    %254 = vmatpush.xpose.msra.mxu0 0.0
    %255 = vmatpush.xpose.msra.mxu0 0.0
    %256 = vmatpush.xpose.msra.mxu0 0.0
    %257 = vmatpush.xpose.msra.mxu0 0.0
    %258 = vmatpush.xpose.msra.mxu0 0.0
    %259 = vmatpush.xpose.msra.mxu0 0.0
    %260 = vmatpush.xpose.msra.mxu0 %v243
    %261 = vmatmul.f32.gmra.mxu0 %v241
    %v262 = vpop.f32.mrf.mxu0
    %v263 = vadd.f32 0.0, %v262
    %264 = vdwg.mxu0
    %266 = vrot.lane.b32.xlu0 %v106, 120
    %v267 = vpop.permute.xlu0 %266
    %v269 = vsel %vm239, %v229, 0
    %v271 = vsel %vm239, %v267, 0
    %273 = vmatpush.xpose.msra.mxu0 0.0
    %274 = vmatpush.xpose.msra.mxu0 0.0
    %275 = vmatpush.xpose.msra.mxu0 0.0
    %276 = vmatpush.xpose.msra.mxu0 0.0
    %277 = vmatpush.xpose.msra.mxu0 0.0
    %278 = vmatpush.xpose.msra.mxu0 0.0
    %279 = vmatpush.xpose.msra.mxu0 0.0
    %280 = vmatpush.xpose.msra.mxu0 0.0
    %281 = vmatpush.xpose.msra.mxu0 0.0
    %282 = vmatpush.xpose.msra.mxu0 0.0
    %283 = vmatpush.xpose.msra.mxu0 0.0
    %284 = vmatpush.xpose.msra.mxu0 0.0
    %285 = vmatpush.xpose.msra.mxu0 0.0
    %286 = vmatpush.xpose.msra.mxu0 0.0
    %287 = vmatpush.xpose.msra.mxu0 0.0
    %288 = vmatpush.xpose.msra.mxu0 %v271
    %289 = vmatmul.f32.gmra.mxu0 %v269
    %v290 = vpop.f32.mrf.mxu0
    %v291 = vadd.f32 0.0, %v290
    %292 = vdwg.mxu0
    %294 = vrot.lane.b32.xlu0 %v126, 120
    %v295 = vpop.permute.xlu0 %294
    %v297 = vsel %vm239, %v230, 0
    %v299 = vsel %vm239, %v295, 0
    %301 = vmatpush.xpose.msra.mxu0 0.0
    %302 = vmatpush.xpose.msra.mxu0 0.0
    %303 = vmatpush.xpose.msra.mxu0 0.0
    %304 = vmatpush.xpose.msra.mxu0 0.0
    %305 = vmatpush.xpose.msra.mxu0 0.0
    %306 = vmatpush.xpose.msra.mxu0 0.0
    %307 = vmatpush.xpose.msra.mxu0 0.0
    %308 = vmatpush.xpose.msra.mxu0 0.0
    %309 = vmatpush.xpose.msra.mxu0 0.0
    %310 = vmatpush.xpose.msra.mxu0 0.0
    %311 = vmatpush.xpose.msra.mxu0 0.0
    %312 = vmatpush.xpose.msra.mxu0 0.0
    %313 = vmatpush.xpose.msra.mxu0 0.0
    %314 = vmatpush.xpose.msra.mxu0 0.0
    %315 = vmatpush.xpose.msra.mxu0 0.0
    %316 = vmatpush.xpose.msra.mxu0 %v299
    %317 = vmatmul.f32.gmra.mxu0 %v297
    %v318 = vpop.f32.mrf.mxu0
    %v319 = vadd.f32 0.0, %v318
    %320 = vdwg.mxu0
    %322 = vrot.lane.b32.xlu0 %v146, 120
    %v323 = vpop.permute.xlu0 %322
    %v325 = vsel %vm239, %v231, 0
    %v327 = vsel %vm239, %v323, 0
    %329 = vmatpush.xpose.msra.mxu0 0.0
    %330 = vmatpush.xpose.msra.mxu0 0.0
    %331 = vmatpush.xpose.msra.mxu0 0.0
    %332 = vmatpush.xpose.msra.mxu0 0.0
    %333 = vmatpush.xpose.msra.mxu0 0.0
    %334 = vmatpush.xpose.msra.mxu0 0.0
    %335 = vmatpush.xpose.msra.mxu0 0.0
    %336 = vmatpush.xpose.msra.mxu0 0.0
    %337 = vmatpush.xpose.msra.mxu0 0.0
    %338 = vmatpush.xpose.msra.mxu0 0.0
    %339 = vmatpush.xpose.msra.mxu0 0.0
    %340 = vmatpush.xpose.msra.mxu0 0.0
    %341 = vmatpush.xpose.msra.mxu0 0.0
    %342 = vmatpush.xpose.msra.mxu0 0.0
    %343 = vmatpush.xpose.msra.mxu0 0.0
    %344 = vmatpush.xpose.msra.mxu0 %v327
    %345 = vmatmul.f32.gmra.mxu0 %v325
    %v346 = vpop.f32.mrf.mxu0
    %v347 = vadd.f32 0.0, %v346
    %348 = vdwg.mxu0
    %350 = vrot.lane.b32.xlu0 %v166, 120
    %v351 = vpop.permute.xlu0 %350
    %v353 = vsel %vm239, %v232, 0
    %v355 = vsel %vm239, %v351, 0
    %357 = vmatpush.xpose.msra.mxu0 0.0
    %358 = vmatpush.xpose.msra.mxu0 0.0
    %359 = vmatpush.xpose.msra.mxu0 0.0
    %360 = vmatpush.xpose.msra.mxu0 0.0
    %361 = vmatpush.xpose.msra.mxu0 0.0
    %362 = vmatpush.xpose.msra.mxu0 0.0
    %363 = vmatpush.xpose.msra.mxu0 0.0
    %364 = vmatpush.xpose.msra.mxu0 0.0
    %365 = vmatpush.xpose.msra.mxu0 0.0
    %366 = vmatpush.xpose.msra.mxu0 0.0
    %367 = vmatpush.xpose.msra.mxu0 0.0
    %368 = vmatpush.xpose.msra.mxu0 0.0
    %369 = vmatpush.xpose.msra.mxu0 0.0
    %370 = vmatpush.xpose.msra.mxu0 0.0
    %371 = vmatpush.xpose.msra.mxu0 0.0
    %372 = vmatpush.xpose.msra.mxu0 %v355
    %373 = vmatmul.f32.gmra.mxu0 %v353
    %v374 = vpop.f32.mrf.mxu0
    %v375 = vadd.f32 0.0, %v374
    %376 = vdwg.mxu0
    %378 = vrot.lane.b32.xlu0 %v186, 120
    %v379 = vpop.permute.xlu0 %378
    %v381 = vsel %vm239, %v233, 0
    %v383 = vsel %vm239, %v379, 0
    %385 = vmatpush.xpose.msra.mxu0 0.0
    %386 = vmatpush.xpose.msra.mxu0 0.0
    %387 = vmatpush.xpose.msra.mxu0 0.0
    %388 = vmatpush.xpose.msra.mxu0 0.0
    %389 = vmatpush.xpose.msra.mxu0 0.0
    %390 = vmatpush.xpose.msra.mxu0 0.0
    %391 = vmatpush.xpose.msra.mxu0 0.0
    %392 = vmatpush.xpose.msra.mxu0 0.0
    %393 = vmatpush.xpose.msra.mxu0 0.0
    %394 = vmatpush.xpose.msra.mxu0 0.0
    %395 = vmatpush.xpose.msra.mxu0 0.0
    %396 = vmatpush.xpose.msra.mxu0 0.0
    %397 = vmatpush.xpose.msra.mxu0 0.0
    %398 = vmatpush.xpose.msra.mxu0 0.0
    %399 = vmatpush.xpose.msra.mxu0 0.0
    %400 = vmatpush.xpose.msra.mxu0 %v383
    %401 = vmatmul.f32.gmra.mxu0 %v381
    %v402 = vpop.f32.mrf.mxu0
    %v403 = vadd.f32 0.0, %v402
    %404 = vdwg.mxu0
    %406 = vrot.lane.b32.xlu0 %v206, 120
    %v407 = vpop.permute.xlu0 %406
    %v409 = vsel %vm239, %v234, 0
    %v411 = vsel %vm239, %v407, 0
    %413 = vmatpush.xpose.msra.mxu0 0.0
    %414 = vmatpush.xpose.msra.mxu0 0.0
    %415 = vmatpush.xpose.msra.mxu0 0.0
    %416 = vmatpush.xpose.msra.mxu0 0.0
    %417 = vmatpush.xpose.msra.mxu0 0.0
    %418 = vmatpush.xpose.msra.mxu0 0.0
    %419 = vmatpush.xpose.msra.mxu0 0.0
    %420 = vmatpush.xpose.msra.mxu0 0.0
    %421 = vmatpush.xpose.msra.mxu0 0.0
    %422 = vmatpush.xpose.msra.mxu0 0.0
    %423 = vmatpush.xpose.msra.mxu0 0.0
    %424 = vmatpush.xpose.msra.mxu0 0.0
    %425 = vmatpush.xpose.msra.mxu0 0.0
    %426 = vmatpush.xpose.msra.mxu0 0.0
    %427 = vmatpush.xpose.msra.mxu0 0.0
    %428 = vmatpush.xpose.msra.mxu0 %v411
    %429 = vmatmul.f32.gmra.mxu0 %v409
    %v430 = vpop.f32.mrf.mxu0
    %v431 = vadd.f32 0.0, %v430
    %432 = vdwg.mxu0
    %434 = vrot.lane.b32.xlu0 %v226, 120
    %v435 = vpop.permute.xlu0 %434
    %v437 = vsel %vm239, %v235, 0
    %v439 = vsel %vm239, %v435, 0
    %441 = vmatpush.xpose.msra.mxu0 0.0
    %442 = vmatpush.xpose.msra.mxu0 0.0
    %443 = vmatpush.xpose.msra.mxu0 0.0
    %444 = vmatpush.xpose.msra.mxu0 0.0
    %445 = vmatpush.xpose.msra.mxu0 0.0
    %446 = vmatpush.xpose.msra.mxu0 0.0
    %447 = vmatpush.xpose.msra.mxu0 0.0
    %448 = vmatpush.xpose.msra.mxu0 0.0
    %449 = vmatpush.xpose.msra.mxu0 0.0
    %450 = vmatpush.xpose.msra.mxu0 0.0
    %451 = vmatpush.xpose.msra.mxu0 0.0
    %452 = vmatpush.xpose.msra.mxu0 0.0
    %453 = vmatpush.xpose.msra.mxu0 0.0
    %454 = vmatpush.xpose.msra.mxu0 0.0
    %455 = vmatpush.xpose.msra.mxu0 0.0
    %456 = vmatpush.xpose.msra.mxu0 %v439
    %457 = vmatmul.f32.gmra.mxu0 %v437
    %v458 = vpop.f32.mrf.mxu0
    %v459 = vadd.f32 0.0, %v458
    %460 = vdwg.mxu0
    %v461 = vsel %vm239, %v263, -inf
    %462 = vmax.xlane.f32.xlu0 %v461
    %v463 = vpop.xlane.xlu0 %462
    %v464 = vsel %vm239, %v291, -inf
    %465 = vmax.xlane.f32.xlu0 %v464
    %v466 = vpop.xlane.xlu0 %465
    %v467 = vsel %vm239, %v319, -inf
    %468 = vmax.xlane.f32.xlu0 %v467
    %v469 = vpop.xlane.xlu0 %468
    %v470 = vsel %vm239, %v347, -inf
    %471 = vmax.xlane.f32.xlu0 %v470
    %v472 = vpop.xlane.xlu0 %471
    %v473 = vsel %vm239, %v375, -inf
    %474 = vmax.xlane.f32.xlu0 %v473
    %v475 = vpop.xlane.xlu0 %474
    %v476 = vsel %vm239, %v403, -inf
    %477 = vmax.xlane.f32.xlu0 %v476
    %v478 = vpop.xlane.xlu0 %477
    %v479 = vsel %vm239, %v431, -inf
    %480 = vmax.xlane.f32.xlu0 %v479
    %v481 = vpop.xlane.xlu0 %480
    %v482 = vsel %vm239, %v459, -inf
    %483 = vmax.xlane.f32.xlu0 %v482
    %v484 = vpop.xlane.xlu0 %483
    %v485 = vsub.f32 %v263, %v463
    %v486 = vsub.f32 %v291, %v466
    %v487 = vsub.f32 %v319, %v469
    %v488 = vsub.f32 %v347, %v472
    %v489 = vsub.f32 %v375, %v475
    %v490 = vsub.f32 %v403, %v478
    %v491 = vsub.f32 %v431, %v481
    %v492 = vsub.f32 %v459, %v484
    %v493 = vmul.f32 %v485, 1.442695
    %v494 = vpow.pop %v493
    %v495 = vmul.f32 %v486, 1.442695
    %v496 = vpow.pop %v495
    %v497 = vmul.f32 %v487, 1.442695
    %v498 = vpow.pop %v497
    %v499 = vmul.f32 %v488, 1.442695
    %v500 = vpow.pop %v499
    %v501 = vmul.f32 %v489, 1.442695
    %v502 = vpow.pop %v501
    %v503 = vmul.f32 %v490, 1.442695
    %v504 = vpow.pop %v503
    %v505 = vmul.f32 %v491, 1.442695
    %v506 = vpow.pop %v505
    %v507 = vmul.f32 %v492, 1.442695
    %v508 = vpow.pop %v507
    %v509 = vsel %vm239, %v494, 0.0
    %510 = vadd.xlane.f32.xlu0 %v509
    %v511 = vpop.xlane.xlu0 %510
    %v512 = vsel %vm239, %v496, 0.0
    %513 = vadd.xlane.f32.xlu0 %v512
    %v514 = vpop.xlane.xlu0 %513
    %v515 = vsel %vm239, %v498, 0.0
    %516 = vadd.xlane.f32.xlu0 %v515
    %v517 = vpop.xlane.xlu0 %516
    %v518 = vsel %vm239, %v500, 0.0
    %519 = vadd.xlane.f32.xlu0 %v518
    %v520 = vpop.xlane.xlu0 %519
    %v521 = vsel %vm239, %v502, 0.0
    %522 = vadd.xlane.f32.xlu0 %v521
    %v523 = vpop.xlane.xlu0 %522
    %v524 = vsel %vm239, %v504, 0.0
    %525 = vadd.xlane.f32.xlu0 %v524
    %v526 = vpop.xlane.xlu0 %525
    %v527 = vsel %vm239, %v506, 0.0
    %528 = vadd.xlane.f32.xlu0 %v527
    %v529 = vpop.xlane.xlu0 %528
    %v530 = vsel %vm239, %v508, 0.0
    %531 = vadd.xlane.f32.xlu0 %v530
    %v532 = vpop.xlane.xlu0 %531
    %v533 = vrcp.pop %v511
    %v534 = vrcp.pop %v514
    %v535 = vrcp.pop %v517
    %v536 = vrcp.pop %v520
    %v537 = vrcp.pop %v523
    %v538 = vrcp.pop %v526
    %v539 = vrcp.pop %v529
    %v540 = vrcp.pop %v532
    %v541 = vmul.f32 %v494, %v533
    %v542 = vmul.f32 %v496, %v534
    %v543 = vmul.f32 %v498, %v535
    %v544 = vmul.f32 %v500, %v536
    %v545 = vmul.f32 %v502, %v537
    %v546 = vmul.f32 %v504, %v538
    %v547 = vmul.f32 %v506, %v539
    %v548 = vmul.f32 %v508, %v540
    %549 = vrot.lane.b32.xlu0 %v83, 112
    %v550 = vpop.permute.xlu0 %549
    %v553 = vsel %vm239, %v541, 0
    %555 = vmatpush.msra.mxu0 0.0
    %556 = vmatpush.msra.mxu0 0.0
    %557 = vmatpush.msra.mxu0 0.0
    %558 = vmatpush.msra.mxu0 0.0
    %559 = vmatpush.msra.mxu0 0.0
    %560 = vmatpush.msra.mxu0 0.0
    %561 = vmatpush.msra.mxu0 0.0
    %562 = vmatpush.msra.mxu0 0.0
    %563 = vmatpush.msra.mxu0 0.0
    %564 = vmatpush.msra.mxu0 0.0
    %565 = vmatpush.msra.mxu0 0.0
    %566 = vmatpush.msra.mxu0 0.0
    %567 = vmatpush.msra.mxu0 0.0
    %568 = vmatpush.msra.mxu0 0.0
    %569 = vmatpush.msra.mxu0 0.0
    %570 = vmatpush.msra.mxu0 %v550
    %571 = vmatmul.f32.gmra.mxu0 %v553
    %v572 = vpop.f32.mrf.mxu0
    %v573 = vadd.f32 0.0, %v572
    %574 = vdwg.mxu0
    %575 = vrot.lane.b32.xlu0 %v106, 112
    %v576 = vpop.permute.xlu0 %575
    %v579 = vsel %vm239, %v542, 0
    %581 = vmatpush.msra.mxu0 0.0
    %582 = vmatpush.msra.mxu0 0.0
    %583 = vmatpush.msra.mxu0 0.0
    %584 = vmatpush.msra.mxu0 0.0
    %585 = vmatpush.msra.mxu0 0.0
    %586 = vmatpush.msra.mxu0 0.0
    %587 = vmatpush.msra.mxu0 0.0
    %588 = vmatpush.msra.mxu0 0.0
    %589 = vmatpush.msra.mxu0 0.0
    %590 = vmatpush.msra.mxu0 0.0
    %591 = vmatpush.msra.mxu0 0.0
    %592 = vmatpush.msra.mxu0 0.0
    %593 = vmatpush.msra.mxu0 0.0
    %594 = vmatpush.msra.mxu0 0.0
    %595 = vmatpush.msra.mxu0 0.0
    %596 = vmatpush.msra.mxu0 %v576
    %597 = vmatmul.f32.gmra.mxu0 %v579
    %v598 = vpop.f32.mrf.mxu0
    %v599 = vadd.f32 0.0, %v598
    %600 = vdwg.mxu0
    %601 = vrot.lane.b32.xlu0 %v126, 112
    %v602 = vpop.permute.xlu0 %601
    %v605 = vsel %vm239, %v543, 0
    %607 = vmatpush.msra.mxu0 0.0
    %608 = vmatpush.msra.mxu0 0.0
    %609 = vmatpush.msra.mxu0 0.0
    %610 = vmatpush.msra.mxu0 0.0
    %611 = vmatpush.msra.mxu0 0.0
    %612 = vmatpush.msra.mxu0 0.0
    %613 = vmatpush.msra.mxu0 0.0
    %614 = vmatpush.msra.mxu0 0.0
    %615 = vmatpush.msra.mxu0 0.0
    %616 = vmatpush.msra.mxu0 0.0
    %617 = vmatpush.msra.mxu0 0.0
    %618 = vmatpush.msra.mxu0 0.0
    %619 = vmatpush.msra.mxu0 0.0
    %620 = vmatpush.msra.mxu0 0.0
    %621 = vmatpush.msra.mxu0 0.0
    %622 = vmatpush.msra.mxu0 %v602
    %623 = vmatmul.f32.gmra.mxu0 %v605
    %v624 = vpop.f32.mrf.mxu0
    %v625 = vadd.f32 0.0, %v624
    %626 = vdwg.mxu0
    %627 = vrot.lane.b32.xlu0 %v146, 112
    %v628 = vpop.permute.xlu0 %627
    %v631 = vsel %vm239, %v544, 0
    %633 = vmatpush.msra.mxu0 0.0
    %634 = vmatpush.msra.mxu0 0.0
    %635 = vmatpush.msra.mxu0 0.0
    %636 = vmatpush.msra.mxu0 0.0
    %637 = vmatpush.msra.mxu0 0.0
    %638 = vmatpush.msra.mxu0 0.0
    %639 = vmatpush.msra.mxu0 0.0
    %640 = vmatpush.msra.mxu0 0.0
    %641 = vmatpush.msra.mxu0 0.0
    %642 = vmatpush.msra.mxu0 0.0
    %643 = vmatpush.msra.mxu0 0.0
    %644 = vmatpush.msra.mxu0 0.0
    %645 = vmatpush.msra.mxu0 0.0
    %646 = vmatpush.msra.mxu0 0.0
    %647 = vmatpush.msra.mxu0 0.0
    %648 = vmatpush.msra.mxu0 %v628
    %649 = vmatmul.f32.gmra.mxu0 %v631
    %v650 = vpop.f32.mrf.mxu0
    %v651 = vadd.f32 0.0, %v650
    %652 = vdwg.mxu0
    %653 = vrot.lane.b32.xlu0 %v166, 112
    %v654 = vpop.permute.xlu0 %653
    %v657 = vsel %vm239, %v545, 0
    %659 = vmatpush.msra.mxu0 0.0
    %660 = vmatpush.msra.mxu0 0.0
    %661 = vmatpush.msra.mxu0 0.0
    %662 = vmatpush.msra.mxu0 0.0
    %663 = vmatpush.msra.mxu0 0.0
    %664 = vmatpush.msra.mxu0 0.0
    %665 = vmatpush.msra.mxu0 0.0
    %666 = vmatpush.msra.mxu0 0.0
    %667 = vmatpush.msra.mxu0 0.0
    %668 = vmatpush.msra.mxu0 0.0
    %669 = vmatpush.msra.mxu0 0.0
    %670 = vmatpush.msra.mxu0 0.0
    %671 = vmatpush.msra.mxu0 0.0
    %672 = vmatpush.msra.mxu0 0.0
    %673 = vmatpush.msra.mxu0 0.0
    %674 = vmatpush.msra.mxu0 %v654
    %675 = vmatmul.f32.gmra.mxu0 %v657
    %v676 = vpop.f32.mrf.mxu0
    %v677 = vadd.f32 0.0, %v676
    %678 = vdwg.mxu0
    %679 = vrot.lane.b32.xlu0 %v186, 112
    %v680 = vpop.permute.xlu0 %679
    %v683 = vsel %vm239, %v546, 0
    %685 = vmatpush.msra.mxu0 0.0
    %686 = vmatpush.msra.mxu0 0.0
    %687 = vmatpush.msra.mxu0 0.0
    %688 = vmatpush.msra.mxu0 0.0
    %689 = vmatpush.msra.mxu0 0.0
    %690 = vmatpush.msra.mxu0 0.0
    %691 = vmatpush.msra.mxu0 0.0
    %692 = vmatpush.msra.mxu0 0.0
    %693 = vmatpush.msra.mxu0 0.0
    %694 = vmatpush.msra.mxu0 0.0
    %695 = vmatpush.msra.mxu0 0.0
    %696 = vmatpush.msra.mxu0 0.0
    %697 = vmatpush.msra.mxu0 0.0
    %698 = vmatpush.msra.mxu0 0.0
    %699 = vmatpush.msra.mxu0 0.0
    %700 = vmatpush.msra.mxu0 %v680
    %701 = vmatmul.f32.gmra.mxu0 %v683
    %v702 = vpop.f32.mrf.mxu0
    %v703 = vadd.f32 0.0, %v702
    %704 = vdwg.mxu0
    %705 = vrot.lane.b32.xlu0 %v206, 112
    %v706 = vpop.permute.xlu0 %705
    %v709 = vsel %vm239, %v547, 0
    %711 = vmatpush.msra.mxu0 0.0
    %712 = vmatpush.msra.mxu0 0.0
    %713 = vmatpush.msra.mxu0 0.0
    %714 = vmatpush.msra.mxu0 0.0
    %715 = vmatpush.msra.mxu0 0.0
    %716 = vmatpush.msra.mxu0 0.0
    %717 = vmatpush.msra.mxu0 0.0
    %718 = vmatpush.msra.mxu0 0.0
    %719 = vmatpush.msra.mxu0 0.0
    %720 = vmatpush.msra.mxu0 0.0
    %721 = vmatpush.msra.mxu0 0.0
    %722 = vmatpush.msra.mxu0 0.0
    %723 = vmatpush.msra.mxu0 0.0
    %724 = vmatpush.msra.mxu0 0.0
    %725 = vmatpush.msra.mxu0 0.0
    %726 = vmatpush.msra.mxu0 %v706
    %727 = vmatmul.f32.gmra.mxu0 %v709
    %v728 = vpop.f32.mrf.mxu0
    %v729 = vadd.f32 0.0, %v728
    %730 = vdwg.mxu0
    %731 = vrot.lane.b32.xlu0 %v226, 112
    %v732 = vpop.permute.xlu0 %731
    %v735 = vsel %vm239, %v548, 0
    %737 = vmatpush.msra.mxu0 0.0
    %738 = vmatpush.msra.mxu0 0.0
    %739 = vmatpush.msra.mxu0 0.0
    %740 = vmatpush.msra.mxu0 0.0
    %741 = vmatpush.msra.mxu0 0.0
    %742 = vmatpush.msra.mxu0 0.0
    %743 = vmatpush.msra.mxu0 0.0
    %744 = vmatpush.msra.mxu0 0.0
    %745 = vmatpush.msra.mxu0 0.0
    %746 = vmatpush.msra.mxu0 0.0
    %747 = vmatpush.msra.mxu0 0.0
    %748 = vmatpush.msra.mxu0 0.0
    %749 = vmatpush.msra.mxu0 0.0
    %750 = vmatpush.msra.mxu0 0.0
    %751 = vmatpush.msra.mxu0 0.0
    %752 = vmatpush.msra.mxu0 %v732
    %753 = vmatmul.f32.gmra.mxu0 %v735
    %v754 = vpop.f32.mrf.mxu0
    %v755 = vadd.f32 0.0, %v754
    %756 = vdwg.mxu0
    %v757 = vld [vmem:[%s4] sm:$0xff]
    %v758 = vld [vmem:[%s4 + $0x8] sm:$0xff]
    %v759 = vld [vmem:[%s4 + $0x10] sm:$0xff]
    %v760 = vld [vmem:[%s4 + $0x18] sm:$0xff]
    %v761 = vld [vmem:[%s4 + $0x20] sm:$0xff]
    %v762 = vld [vmem:[%s4 + $0x28] sm:$0xff]
    %v763 = vld [vmem:[%s4 + $0x30] sm:$0xff]
    %v764 = vld [vmem:[%s4 + $0x38] sm:$0xff]
    %v766 = vsel %vm239, %v573, 0
    %768 = vmatpush.msra.mxu0 0.0
    %769 = vmatpush.msra.mxu0 0.0
    %770 = vmatpush.msra.mxu0 0.0
    %771 = vmatpush.msra.mxu0 0.0
    %772 = vmatpush.msra.mxu0 0.0
    %773 = vmatpush.msra.mxu0 0.0
    %774 = vmatpush.msra.mxu0 0.0
    %775 = vmatpush.msra.mxu0 0.0
    %776 = vmatpush.msra.mxu0 0.0
    %777 = vmatpush.msra.mxu0 0.0
    %778 = vmatpush.msra.mxu0 0.0
    %779 = vmatpush.msra.mxu0 0.0
    %780 = vmatpush.msra.mxu0 0.0
    %781 = vmatpush.msra.mxu0 0.0
    %782 = vmatpush.msra.mxu0 0.0
    %783 = vmatpush.msra.mxu0 %v757
    %784 = vmatmul.f32.gmra.mxu0 %v766
    %v785 = vpop.f32.mrf.mxu0
    %v786 = vadd.f32 0.0, %v785
    %787 = vdwg.mxu0
    %v789 = vsel %vm239, %v599, 0
    %791 = vmatpush.msra.mxu0 0.0
    %792 = vmatpush.msra.mxu0 0.0
    %793 = vmatpush.msra.mxu0 0.0
    %794 = vmatpush.msra.mxu0 0.0
    %795 = vmatpush.msra.mxu0 0.0
    %796 = vmatpush.msra.mxu0 0.0
    %797 = vmatpush.msra.mxu0 0.0
    %798 = vmatpush.msra.mxu0 0.0
    %799 = vmatpush.msra.mxu0 0.0
    %800 = vmatpush.msra.mxu0 0.0
    %801 = vmatpush.msra.mxu0 0.0
    %802 = vmatpush.msra.mxu0 0.0
    %803 = vmatpush.msra.mxu0 0.0
    %804 = vmatpush.msra.mxu0 0.0
    %805 = vmatpush.msra.mxu0 0.0
    %806 = vmatpush.msra.mxu0 %v758
    %807 = vmatmul.f32.gmra.mxu0 %v789
    %v808 = vpop.f32.mrf.mxu0
    %v809 = vadd.f32 0.0, %v808
    %810 = vdwg.mxu0
    %v812 = vsel %vm239, %v625, 0
    %814 = vmatpush.msra.mxu0 0.0
    %815 = vmatpush.msra.mxu0 0.0
    %816 = vmatpush.msra.mxu0 0.0
    %817 = vmatpush.msra.mxu0 0.0
    %818 = vmatpush.msra.mxu0 0.0
    %819 = vmatpush.msra.mxu0 0.0
    %820 = vmatpush.msra.mxu0 0.0
    %821 = vmatpush.msra.mxu0 0.0
    %822 = vmatpush.msra.mxu0 0.0
    %823 = vmatpush.msra.mxu0 0.0
    %824 = vmatpush.msra.mxu0 0.0
    %825 = vmatpush.msra.mxu0 0.0
    %826 = vmatpush.msra.mxu0 0.0
    %827 = vmatpush.msra.mxu0 0.0
    %828 = vmatpush.msra.mxu0 0.0
    %829 = vmatpush.msra.mxu0 %v759
    %830 = vmatmul.f32.gmra.mxu0 %v812
    %v831 = vpop.f32.mrf.mxu0
    %v832 = vadd.f32 0.0, %v831
    %833 = vdwg.mxu0
    %v835 = vsel %vm239, %v651, 0
    %837 = vmatpush.msra.mxu0 0.0
    %838 = vmatpush.msra.mxu0 0.0
    %839 = vmatpush.msra.mxu0 0.0
    %840 = vmatpush.msra.mxu0 0.0
    %841 = vmatpush.msra.mxu0 0.0
    %842 = vmatpush.msra.mxu0 0.0
    %843 = vmatpush.msra.mxu0 0.0
    %844 = vmatpush.msra.mxu0 0.0
    %845 = vmatpush.msra.mxu0 0.0
    %846 = vmatpush.msra.mxu0 0.0
    %847 = vmatpush.msra.mxu0 0.0
    %848 = vmatpush.msra.mxu0 0.0
    %849 = vmatpush.msra.mxu0 0.0
    %850 = vmatpush.msra.mxu0 0.0
    %851 = vmatpush.msra.mxu0 0.0
    %852 = vmatpush.msra.mxu0 %v760
    %853 = vmatmul.f32.gmra.mxu0 %v835
    %v854 = vpop.f32.mrf.mxu0
    %v855 = vadd.f32 0.0, %v854
    %856 = vdwg.mxu0
    %v858 = vsel %vm239, %v677, 0
    %860 = vmatpush.msra.mxu0 0.0
    %861 = vmatpush.msra.mxu0 0.0
    %862 = vmatpush.msra.mxu0 0.0
    %863 = vmatpush.msra.mxu0 0.0
    %864 = vmatpush.msra.mxu0 0.0
    %865 = vmatpush.msra.mxu0 0.0
    %866 = vmatpush.msra.mxu0 0.0
    %867 = vmatpush.msra.mxu0 0.0
    %868 = vmatpush.msra.mxu0 0.0
    %869 = vmatpush.msra.mxu0 0.0
    %870 = vmatpush.msra.mxu0 0.0
    %871 = vmatpush.msra.mxu0 0.0
    %872 = vmatpush.msra.mxu0 0.0
    %873 = vmatpush.msra.mxu0 0.0
    %874 = vmatpush.msra.mxu0 0.0
    %875 = vmatpush.msra.mxu0 %v761
    %876 = vmatmul.f32.gmra.mxu0 %v858
    %v877 = vpop.f32.mrf.mxu0
    %v878 = vadd.f32 0.0, %v877
    %879 = vdwg.mxu0
    %v881 = vsel %vm239, %v703, 0
    %883 = vmatpush.msra.mxu0 0.0
    %884 = vmatpush.msra.mxu0 0.0
    %885 = vmatpush.msra.mxu0 0.0
    %886 = vmatpush.msra.mxu0 0.0
    %887 = vmatpush.msra.mxu0 0.0
    %888 = vmatpush.msra.mxu0 0.0
    %889 = vmatpush.msra.mxu0 0.0
    %890 = vmatpush.msra.mxu0 0.0
    %891 = vmatpush.msra.mxu0 0.0
    %892 = vmatpush.msra.mxu0 0.0
    %893 = vmatpush.msra.mxu0 0.0
    %894 = vmatpush.msra.mxu0 0.0
    %895 = vmatpush.msra.mxu0 0.0
    %896 = vmatpush.msra.mxu0 0.0
    %897 = vmatpush.msra.mxu0 0.0
    %898 = vmatpush.msra.mxu0 %v762
    %899 = vmatmul.f32.gmra.mxu0 %v881
    %v900 = vpop.f32.mrf.mxu0
    %v901 = vadd.f32 0.0, %v900
    %902 = vdwg.mxu0
    %v904 = vsel %vm239, %v729, 0
    %906 = vmatpush.msra.mxu0 0.0
    %907 = vmatpush.msra.mxu0 0.0
    %908 = vmatpush.msra.mxu0 0.0
    %909 = vmatpush.msra.mxu0 0.0
    %910 = vmatpush.msra.mxu0 0.0
    %911 = vmatpush.msra.mxu0 0.0
    %912 = vmatpush.msra.mxu0 0.0
    %913 = vmatpush.msra.mxu0 0.0
    %914 = vmatpush.msra.mxu0 0.0
    %915 = vmatpush.msra.mxu0 0.0
    %916 = vmatpush.msra.mxu0 0.0
    %917 = vmatpush.msra.mxu0 0.0
    %918 = vmatpush.msra.mxu0 0.0
    %919 = vmatpush.msra.mxu0 0.0
    %920 = vmatpush.msra.mxu0 0.0
    %921 = vmatpush.msra.mxu0 %v763
    %922 = vmatmul.f32.gmra.mxu0 %v904
    %v923 = vpop.f32.mrf.mxu0
    %v924 = vadd.f32 0.0, %v923
    %925 = vdwg.mxu0
    %v927 = vsel %vm239, %v755, 0
    %929 = vmatpush.msra.mxu0 0.0
    %930 = vmatpush.msra.mxu0 0.0
    %931 = vmatpush.msra.mxu0 0.0
    %932 = vmatpush.msra.mxu0 0.0
    %933 = vmatpush.msra.mxu0 0.0
    %934 = vmatpush.msra.mxu0 0.0
    %935 = vmatpush.msra.mxu0 0.0
    %936 = vmatpush.msra.mxu0 0.0
    %937 = vmatpush.msra.mxu0 0.0
    %938 = vmatpush.msra.mxu0 0.0
    %939 = vmatpush.msra.mxu0 0.0
    %940 = vmatpush.msra.mxu0 0.0
    %941 = vmatpush.msra.mxu0 0.0
    %942 = vmatpush.msra.mxu0 0.0
    %943 = vmatpush.msra.mxu0 0.0
    %944 = vmatpush.msra.mxu0 %v764
    %945 = vmatmul.f32.gmra.mxu0 %v927
    %v946 = vpop.f32.mrf.mxu0
    %v947 = vadd.f32 0.0, %v946
    %948 = vdwg.mxu0
    %v949 = vadd.f32 %v786, %v832
    %v950 = vadd.f32 %v809, %v855
    %v951 = vadd.f32 %v949, %v878
    %v952 = vadd.f32 %v950, %v901
    %v953 = vadd.f32 %v951, %v924
    %v954 = vadd.f32 %v952, %v947
    %v955 = vadd.f32 %v953, %v27
    %v956 = vadd.f32 %v954, %v28
    %v957 = vsel %vm61, %v955, 0.0
    %958 = vadd.xlane.f32.xlu0 %v957
    %v959 = vpop.xlane.xlu0 %958
    %v960 = vsel %vm61, %v956, 0.0
    %961 = vadd.xlane.f32.xlu0 %v960
    %v962 = vpop.xlane.xlu0 %961
    %v963 = vrcp.pop 32.0
    %v964 = vmul.f32 32.0, %v963
    %v965 = vsub.f32 1.0, %v964
    %v966 = vmul.f32 %v963, %v965
    %v967 = vadd.f32 %v963, %v966
    %vm968 = vweird.f32 %v963
    %v969 = vsel %vm968, %v963, %v967
    %v970 = vmul.f32 %v959, %v969
    %v971 = vmul.f32 %v962, %v969
    %v972 = vsub.f32 %v955, %v970
    %v973 = vsub.f32 %v956, %v971
    %v974 = vmul.f32 %v972, %v972
    %v975 = vmul.f32 %v973, %v973
    %v976 = vsel %vm61, %v974, 0.0
    %977 = vadd.xlane.f32.xlu0 %v976
    %v978 = vpop.xlane.xlu0 %977
    %v979 = vsel %vm61, %v975, 0.0
    %980 = vadd.xlane.f32.xlu0 %v979
    %v981 = vpop.xlane.xlu0 %980
    %v982 = vmul.f32 %v978, %v969
    %v983 = vmul.f32 %v981, %v969
    %v984 = vadd.f32 %v982, 1e-06
    %v985 = vadd.f32 %v983, 1e-06
    %v986 = vrsqrt.pop %v984
    %v987 = vmul.f32 %v986, %v984
    %v988 = vmul.f32 %v987, %v986
    %v989 = vmul.f32 0.5, %v988
    %v990 = vsub.f32 1.5, %v989
    %v991 = vmul.f32 %v986, %v990
    %vm992 = vweird.f32 %v984
    %vm993 = vweird.f32 %v986
    %vm994 = vmor %vm992, %vm993
    %v995 = vsel %vm994, %v986, %v991
    %v996 = vrsqrt.pop %v985
    %v997 = vmul.f32 %v996, %v985
    %v998 = vmul.f32 %v997, %v996
    %v999 = vmul.f32 0.5, %v998
    %v1000 = vsub.f32 1.5, %v999
    %v1001 = vmul.f32 %v996, %v1000
    %vm1002 = vweird.f32 %v985
    %vm1003 = vweird.f32 %v996
    %vm1004 = vmor %vm1002, %vm1003
    %v1005 = vsel %vm1004, %v996, %v1001
    %v1006 = vmul.f32 %v972, %v995
    %v1007 = vmul.f32 %v973, %v1005
    %v1008 = vld [vmem:[%s5] sm:$0x1]
    %v1010 = vperm.slane %v1008, 0
    %v1012 = vmul.f32 %v1006, %v1010
    %v1013 = vmul.f32 %v1007, %v1010
    %v1014 = vld [vmem:[%s6] sm:$0x1]
    %v1016 = vperm.slane %v1014, 0
    %v1018 = vadd.f32 %v1012, %v1016
    %v1019 = vadd.f32 %v1013, %v1016
    %1020 = vst.msk [vmem:[#allocation2] sm:$0xff] %vm61, %v1018
    %1021 = vst.msk [vmem:[#allocation2 + $0x8] sm:$0xff] %vm61, %v1019
    // Predicated region
    $region30: #{tpu_custom_call.1} parent=1 // pred_check
      _
    $region31: #{tpu_custom_call.1} parent=1 // pred_check_branch
      %1023 = sbr.rel (0) target = $region33
    $region32: #{tpu_custom_call.1} parent=1 // pred_region
      %1025 = vsyncadd [#allocation3], 0
      %s1026 = sshll.u32 [#allocation2], 4
      %s1027 = int_to_ptr.vmem [resolvable:$true] %s1026
      %s1028 = sshll.u32 %s7, 4
      %s1029 = int_to_ptr.hbm [resolvable:$true] %s1028
      %1034 = dma.vmem_to_hbm [thread:$0]  %s1027, 256, %s1029, [#allocation3], 128, 128, 8
    $region33: #{tpu_custom_call.1} parent=1 // pred_fallthru
      _
    // Predicated region
    $region34: #{tpu_custom_call.1} parent=1 // pred_check
      _
    $region35: #{tpu_custom_call.1} parent=1 // pred_check_branch
      %1036 = sbr.rel (0) target = $region37
    $region36: #{tpu_custom_call.1} parent=1 // pred_region
      %1038 = dma.done [#allocation3], 256
    $region37: #{tpu_custom_call.1} parent=1 // pred_fallthru
      _
    %1039 = vsyncpa [#allocation3], 1

</llo_original>
